<compile_context>
chip_gen: v7x
topology: tpu7x:2x2x1
jax: 0.10.0
libtpu: 0.0.40
codegen_flags: <defaults>
</compile_context>

<pallas_src>
import functools
import math

import jax
import jax.numpy as jnp
from jax.experimental import pallas as pl
from jax.experimental.pallas import tpu as pltpu

BF16 = jnp.bfloat16
F32 = jnp.float32

# Scoped VMEM cap: above the 32 MiB default, below every chip's physical VMEM
# (v7x has 64 MiB total), leaving headroom for double-buffered activations.
_VMEM_LIMIT = 48 * 1024 * 1024


# ---------------------------------------------------------------------------
# Helpers
# ---------------------------------------------------------------------------

def _pick_tm(m, cap=512):
    """Largest 8-aligned row tile (<= cap) that evenly divides m.

    Allows cand == m so small problems run in a single grid step (no extra
    ~0.35 us per-step overhead / extra activation DMAs).
    """
    for cand in (512, 256, 128, 64, 32, 16, 8):
        if cand <= cap and cand <= m and m % cand == 0:
            return cand
    return m


def _gelu(y):
    # TODO(synk): tanh-approximate GELU (HF BERT uses erf-based gelu; small drift).
    c = math.sqrt(2.0 / math.pi)
    return 0.5 * y * (1.0 + jnp.tanh(c * (y + 0.044715 * y * y * y)))


def _layernorm(y, gamma, beta, eps):
    mean = jnp.mean(y, axis=-1, keepdims=True)
    var = jnp.mean((y - mean) * (y - mean), axis=-1, keepdims=True)
    return (y - mean) * jax.lax.rsqrt(var + eps) * gamma + beta


# ---------------------------------------------------------------------------
# Embedding LayerNorm kernel (f32 in, bf16 out)
# ---------------------------------------------------------------------------

def _layernorm_kernel(x_ref, g_ref, b_ref, o_ref, *, eps):
    y = _layernorm(x_ref[...].astype(F32), g_ref[...], b_ref[...], eps)
    o_ref[...] = y.astype(o_ref.dtype)


def layernorm(x, gamma, beta, eps=1e-12):
    M, H = x.shape
    tm = _pick_tm(M)
    return pl.pallas_call(
        functools.partial(_layernorm_kernel, eps=eps),
        out_shape=jax.ShapeDtypeStruct((M, H), BF16),
        grid=(M // tm,),
        in_specs=[
            pl.BlockSpec((tm, H), lambda i: (i, 0)),
            pl.BlockSpec((1, H), lambda i: (0, 0)),
            pl.BlockSpec((1, H), lambda i: (0, 0)),
        ],
        out_specs=pl.BlockSpec((tm, H), lambda i: (i, 0)),
        compiler_params=pltpu.CompilerParams(
            dimension_semantics=("parallel",), vmem_limit_bytes=_VMEM_LIMIT),
    )(x, gamma, beta)


# ---------------------------------------------------------------------------
# Fused attention block: QKV proj + MHA + output proj + residual + LN1
# grid = (batch, head); head axis is a reduction into a VMEM f32 accumulator.
# ---------------------------------------------------------------------------

def _attn_block_kernel(x_ref, wq_ref, bq_ref, wk_ref, bk_ref, wv_ref, bv_ref,
                       wo_ref, bo_ref, g_ref, bt_ref, m_ref, o_ref, acc_ref,
                       *, scale, eps):
    h = pl.program_id(1)

    @pl.when(h == 0)
    def _():
        acc_ref[...] = jnp.zeros_like(acc_ref)

    xb = x_ref[0]                                                  # (S, H) bf16
    # per-head Q/K/V projections (fused into the kernel; f32 accumulation)
    q = jnp.dot(xb, wq_ref[0], preferred_element_type=F32) + bq_ref[0]   # (S, hd)
    k = jnp.dot(xb, wk_ref[0], preferred_element_type=F32) + bk_ref[0]
    v = jnp.dot(xb, wv_ref[0], preferred_element_type=F32) + bv_ref[0]

    bias = (1.0 - m_ref[0]) * (-1e9)                               # (1, S)
    s = jnp.einsum("qd,kd->qk", q.astype(BF16), k.astype(BF16),
                   preferred_element_type=F32) * scale + bias      # (S, S) f32
    s = s - jnp.max(s, axis=-1, keepdims=True)
    p = jnp.exp(s)
    p = p * pl.reciprocal(jnp.sum(p, axis=-1, keepdims=True), approx=True)  # EUP

    ctx = jnp.dot(p.astype(BF16), v.astype(BF16),
                  preferred_element_type=F32)                      # (S, hd)
    # accumulate this head's slice of the output projection: ctx_h @ Wo_h
    acc_ref[...] += jnp.dot(ctx.astype(BF16), wo_ref[0],
                            preferred_element_type=F32)            # (S, H)

    @pl.when(h == pl.num_programs(1) - 1)
    def _():
        y = acc_ref[...] + bo_ref[...] + x_ref[0].astype(F32)      # residual
        o_ref[0] = _layernorm(y, g_ref[...], bt_ref[...], eps).astype(o_ref.dtype)


def attention_block(x_bsh, mask_b1s, lp, eps=1e-12):
    B, S, H = x_bsh.shape
    n_heads, _, hd = lp["wq"].shape
    scale = 1.0 / math.sqrt(hd)
    head_spec = pl.BlockSpec((1, H, hd), lambda b, h: (h, 0, 0))
    head_bias_spec = pl.BlockSpec((1, 1, hd), lambda b, h: (h, 0, 0))
    row_spec = pl.BlockSpec((1, H), lambda b, h: (0, 0))
    return pl.pallas_call(
        functools.partial(_attn_block_kernel, scale=scale, eps=eps),
        out_shape=jax.ShapeDtypeStruct((B, S, H), BF16),
        grid=(B, n_heads),
        in_specs=[
            pl.BlockSpec((1, S, H), lambda b, h: (b, 0, 0)),       # x (resident over heads)
            head_spec, head_bias_spec,                             # wq, bq
            head_spec, head_bias_spec,                             # wk, bk
            head_spec, head_bias_spec,                             # wv, bv
            pl.BlockSpec((1, hd, H), lambda b, h: (h, 0, 0)),      # wo (per-head slab)
            row_spec,                                              # bo
            row_spec, row_spec,                                    # ln1 gamma, beta
            pl.BlockSpec((1, 1, S), lambda b, h: (b, 0, 0)),       # attention mask
        ],
        out_specs=pl.BlockSpec((1, S, H), lambda b, h: (b, 0, 0)),
        scratch_shapes=[pltpu.VMEM((S, H), F32)],
        compiler_params=pltpu.CompilerParams(
            dimension_semantics=("parallel", "arbitrary"),
            vmem_limit_bytes=_VMEM_LIMIT),
    )(x_bsh, lp["wq"], lp["bq"], lp["wk"], lp["bk"], lp["wv"], lp["bv"],
      lp["wo"], lp["bo"], lp["ln1_g"], lp["ln1_b"], mask_b1s)


# ---------------------------------------------------------------------------
# Fused FFN block: w1 + gelu + w2 + residual + LN2 (bf16 in/out, f32 math)
# ---------------------------------------------------------------------------

def _ffn_kernel(x_ref, w1_ref, b1_ref, w2_ref, b2_ref, g_ref, bt_ref, o_ref, *, eps):
    xb = x_ref[...]                                                # (tm, H) bf16
    hcur = jnp.dot(xb, w1_ref[...], preferred_element_type=F32) + b1_ref[...]
    hcur = _gelu(hcur)
    y = (jnp.dot(hcur.astype(BF16), w2_ref[...], preferred_element_type=F32)
         + b2_ref[...] + xb.astype(F32))
    o_ref[...] = _layernorm(y, g_ref[...], bt_ref[...], eps).astype(o_ref.dtype)


def ffn_residual_layernorm(x, lp, eps=1e-12):
    M, H = x.shape
    I = lp["w1"].shape[1]
    tm = _pick_tm(M)
    return pl.pallas_call(
        functools.partial(_ffn_kernel, eps=eps),
        out_shape=jax.ShapeDtypeStruct((M, H), BF16),
        grid=(M // tm,),
        in_specs=[
            pl.BlockSpec((tm, H), lambda i: (i, 0)),
            pl.BlockSpec((H, I), lambda i: (0, 0)),   # weights resident over row grid
            pl.BlockSpec((1, I), lambda i: (0, 0)),
            pl.BlockSpec((I, H), lambda i: (0, 0)),
            pl.BlockSpec((1, H), lambda i: (0, 0)),
            pl.BlockSpec((1, H), lambda i: (0, 0)),
            pl.BlockSpec((1, H), lambda i: (0, 0)),
        ],
        out_specs=pl.BlockSpec((tm, H), lambda i: (i, 0)),
        compiler_params=pltpu.CompilerParams(
            dimension_semantics=("parallel",), vmem_limit_bytes=_VMEM_LIMIT),
    )(x, lp["w1"], lp["b1"], lp["w2"], lp["b2"], lp["ln2_g"], lp["ln2_b"])


# ---------------------------------------------------------------------------
# Fused pooler (tanh linear on CLS) + dropout(eval) + classifier head
# ---------------------------------------------------------------------------

def _pool_cls_kernel(x_ref, pw_ref, pb_ref, cw_ref, cb_ref, o_ref):
    x = x_ref[...]                                                 # (B, S, H) bf16
    cls = x[:, 0, :]                                               # CLS rows (B, H)
    pooled = jnp.tanh(jnp.dot(cls, pw_ref[...],
                              preferred_element_type=F32) + pb_ref[...])
    # TODO(synk): training-mode dropout before the classifier not implemented; eval identity.
    logits = jnp.dot(pooled.astype(BF16), cw_ref[...],
                     preferred_element_type=F32) + cb_ref[...]
    o_ref[...] = logits.astype(o_ref.dtype)


def pool_and_classify(x_bsh, pool_w, pool_b, cls_w, cls_b):
    B, S, H = x_bsh.shape
    C = cls_w.shape[1]
    return pl.pallas_call(
        _pool_cls_kernel,
        out_shape=jax.ShapeDtypeStruct((B, C), F32),
        grid=(1,),
        in_specs=[
            pl.BlockSpec((B, S, H), lambda i: (0, 0, 0)),   # full block; CLS sliced in-kernel
            pl.BlockSpec((H, H), lambda i: (0, 0)),
            pl.BlockSpec((1, H), lambda i: (0, 0)),
            pl.BlockSpec((H, C), lambda i: (0, 0)),
            pl.BlockSpec((1, C), lambda i: (0, 0)),
        ],
        out_specs=pl.BlockSpec((B, C), lambda i: (0, 0)),
        compiler_params=pltpu.CompilerParams(
            dimension_semantics=("arbitrary",), vmem_limit_bytes=_VMEM_LIMIT),
    )(x_bsh, pool_w, pool_b, cls_w, cls_b)


# ---------------------------------------------------------------------------
# Parameter init (deterministic, synthetic "mini BERT"); weights stored bf16
# in the per-head layouts the kernels consume (one-time host-side shuffle).
# ---------------------------------------------------------------------------

def init_params(key, *, vocab_size, max_pos, hidden, n_layers, n_heads, inter, n_classes):
    hd = hidden // n_heads

    def norm(k, shape, scale=0.02):
        return scale * jax.random.normal(k, shape, dtype=F32)

    keys = iter(jax.random.split(key, 16 + n_layers * 16))
    p = {
        "word_emb": norm(next(keys), (vocab_size, hidden)),
        "pos_emb": norm(next(keys), (max_pos, hidden)),
        "type_emb": norm(next(keys), (2, hidden)),
        "emb_ln_g": jnp.ones((1, hidden), F32),
        "emb_ln_b": jnp.zeros((1, hidden), F32),
        "layers": [],
        "pool_w": norm(next(keys), (hidden, hidden)).astype(BF16),
        "pool_b": jnp.zeros((1, hidden), F32),
        "cls_w": norm(next(keys), (hidden, n_classes)).astype(BF16),
        "cls_b": jnp.zeros((1, n_classes), F32),
    }

    def per_head_in(w):   # (H, H) -> (n_heads, H, hd)
        return w.reshape(hidden, n_heads, hd).transpose(1, 0, 2).astype(BF16)

    for _ in range(n_layers):
        lp = {
            "wq": per_head_in(norm(next(keys), (hidden, hidden))),
            "bq": jnp.zeros((n_heads, 1, hd), F32),
            "wk": per_head_in(norm(next(keys), (hidden, hidden))),
            "bk": jnp.zeros((n_heads, 1, hd), F32),
            "wv": per_head_in(norm(next(keys), (hidden, hidden))),
            "bv": jnp.zeros((n_heads, 1, hd), F32),
            # output projection stored as per-head slabs (n_heads, hd, H)
            "wo": norm(next(keys), (hidden, hidden)).reshape(n_heads, hd, hidden).astype(BF16),
            "bo": jnp.zeros((1, hidden), F32),
            "ln1_g": jnp.ones((1, hidden), F32),
            "ln1_b": jnp.zeros((1, hidden), F32),
            "w1": norm(next(keys), (hidden, inter)).astype(BF16),
            "b1": jnp.zeros((1, inter), F32),
            "w2": norm(next(keys), (inter, hidden)).astype(BF16),
            "b2": jnp.zeros((1, hidden), F32),
            "ln2_g": jnp.ones((1, hidden), F32),
            "ln2_b": jnp.zeros((1, hidden), F32),
        }
        p["layers"].append(lp)
    return p


# ---------------------------------------------------------------------------
# Forward pass (mirrors TextClassifier.forward in eval mode)
# ---------------------------------------------------------------------------

def text_classifier_forward(params, input_ids, attention_mask):
    B, S = input_ids.shape
    H = params["word_emb"].shape[1]
    mask_b1s = attention_mask.astype(F32).reshape(B, 1, S)

    # Embedding lookups stay as XLA glue (gather); everything else is Pallas.
    # token_type ids are hard-coded to type 0 (matches the synthetic setup).
    emb = (jnp.take(params["word_emb"], input_ids, axis=0)
           + params["pos_emb"][:S][None, :, :]
           + params["type_emb"][0][None, None, :])
    x = layernorm(emb.reshape(B * S, H), params["emb_ln_g"], params["emb_ln_b"])  # bf16

    for lp in params["layers"]:
        # fused QKV proj + attention + output proj + residual + LN1 (1 call)
        x = attention_block(x.reshape(B, S, H), mask_b1s, lp)
        # fused FFN: w1 + gelu + w2 + residual + LN2 (1 call)
        x = ffn_residual_layernorm(x.reshape(B * S, H), lp)

    # fused pooler + dropout(eval identity) + classifier
    logits = pool_and_classify(x.reshape(B, S, H), params["pool_w"], params["pool_b"],
                               params["cls_w"], params["cls_b"])
    return logits                                                  # (B, n_classes) f32


# ---------------------------------------------------------------------------
# Main
# ---------------------------------------------------------------------------

if __name__ == "__main__":
    B, S = 2, 8
    HIDDEN, N_HEADS, N_LAYERS, INTER = 32, 2, 2, 64
    VOCAB, MAX_POS, N_CLASSES = 100, 64, 3

    key = jax.random.PRNGKey(0)
    k_param, k_ids = jax.random.split(key)

    params = init_params(
        k_param, vocab_size=VOCAB, max_pos=MAX_POS, hidden=HIDDEN,
        n_layers=N_LAYERS, n_heads=N_HEADS, inter=INTER, n_classes=N_CLASSES,
    )

    input_ids = jax.random.randint(k_ids, (B, S), 0, VOCAB, dtype=jnp.int32)
    attention_mask = jnp.array(
        [[1, 1, 1, 1, 1, 1, 1, 1],
         [1, 1, 1, 1, 1, 0, 0, 0]], dtype=jnp.int32)

    logits = text_classifier_forward(params, input_ids, attention_mask)
    logits = jax.block_until_ready(logits)
    assert logits.shape == (B, N_CLASSES) and logits.dtype == jnp.float32
    assert bool(jnp.all(jnp.isfinite(logits)))
    print("KERNEL_OK")
</pallas_src>

<mosaic_0001>
module attributes {stable_mosaic.version = 11 : i64} {
  func.func @_layernorm_kernel(%arg0: i32, %arg1: memref<16x32xf32, #tpu.memory_space<vmem>>, %arg2: memref<1x32xf32, #tpu.memory_space<vmem>>, %arg3: memref<1x32xf32, #tpu.memory_space<vmem>>, %arg4: memref<16x32xbf16, #tpu.memory_space<vmem>>) attributes {dimension_semantics = [#tpu.dimension_semantics<parallel>], iteration_bounds = array<i64: 1>, scalar_prefetch = 0 : i64, scratch_operands = 0 : i64, tpu.core_type = #tpu.core_type<tc>, window_params = [{transform_indices = @transform_0, window_bounds = array<i64: 16, 32>}, {pipeline_mode = #tpu.pipeline_mode<synchronous>, transform_indices = @transform_1, window_bounds = array<i64: 1, 32>}, {pipeline_mode = #tpu.pipeline_mode<synchronous>, transform_indices = @transform_2, window_bounds = array<i64: 1, 32>}, {transform_indices = @transform_3, window_bounds = array<i64: 16, 32>}]} {
    %c0 = arith.constant 0 : index
    %c0_0 = arith.constant 0 : index
    %0 = vector.load %arg1[%c0, %c0_0] : memref<16x32xf32, #tpu.memory_space<vmem>>, vector<16x32xf32>
    %c0_1 = arith.constant 0 : index
    %c0_2 = arith.constant 0 : index
    %1 = vector.load %arg2[%c0_1, %c0_2] : memref<1x32xf32, #tpu.memory_space<vmem>>, vector<1x32xf32>
    %c0_3 = arith.constant 0 : index
    %c0_4 = arith.constant 0 : index
    %2 = vector.load %arg3[%c0_3, %c0_4] : memref<1x32xf32, #tpu.memory_space<vmem>>, vector<1x32xf32>
    %cst = arith.constant dense<0.000000e+00> : vector<16xf32>
    %3 = vector.multi_reduction <add>, %0, %cst [1] : vector<16x32xf32> to vector<16xf32>
    %4 = vector.shape_cast %3 : vector<16xf32> to vector<16x1xf32>
    %cst_5 = arith.constant 3.200000e+01 : f32
    %5 = vector.broadcast %cst_5 : f32 to vector<16x1xf32>
    %6 = arith.divf %4, %5 : vector<16x1xf32>
    %7 = vector.broadcast %6 : vector<16x1xf32> to vector<16x32xf32>
    %8 = arith.subf %0, %7 : vector<16x32xf32>
    %9 = vector.broadcast %6 : vector<16x1xf32> to vector<16x32xf32>
    %10 = arith.subf %0, %9 : vector<16x32xf32>
    %11 = arith.mulf %8, %10 : vector<16x32xf32>
    %cst_6 = arith.constant dense<0.000000e+00> : vector<16xf32>
    %12 = vector.multi_reduction <add>, %11, %cst_6 [1] : vector<16x32xf32> to vector<16xf32>
    %13 = vector.shape_cast %12 : vector<16xf32> to vector<16x1xf32>
    %cst_7 = arith.constant 3.200000e+01 : f32
    %14 = vector.broadcast %cst_7 : f32 to vector<16x1xf32>
    %15 = arith.divf %13, %14 : vector<16x1xf32>
    %16 = vector.broadcast %6 : vector<16x1xf32> to vector<16x32xf32>
    %17 = arith.subf %0, %16 : vector<16x32xf32>
    %cst_8 = arith.constant 9.99999996E-13 : f32
    %18 = vector.broadcast %cst_8 : f32 to vector<16x1xf32>
    %19 = arith.addf %15, %18 : vector<16x1xf32>
    %20 = math.rsqrt %19 : vector<16x1xf32>
    %21 = vector.broadcast %20 : vector<16x1xf32> to vector<16x32xf32>
    %22 = arith.mulf %17, %21 : vector<16x32xf32>
    %23 = vector.broadcast %1 : vector<1x32xf32> to vector<16x32xf32>
    %24 = arith.mulf %22, %23 : vector<16x32xf32>
    %25 = vector.broadcast %2 : vector<1x32xf32> to vector<16x32xf32>
    %26 = arith.addf %24, %25 : vector<16x32xf32>
    %27 = arith.truncf %26 : vector<16x32xf32> to vector<16x32xbf16>
    %c0_9 = arith.constant 0 : index
    %c0_10 = arith.constant 0 : index
    %28 = vector.load %arg4[%c0_9, %c0_10] : memref<16x32xbf16, #tpu.memory_space<vmem>>, vector<16x32xbf16>
    tpu.vector_store %arg4[%c0_9, %c0_10], %27 {strides = array<i32>} : memref<16x32xbf16, #tpu.memory_space<vmem>>, vector<16x32xbf16>,
    return
  }
  func.func @transform_0(%arg0: i32) -> (i32, i32) {
    %c0_i32 = arith.constant 0 : i32
    %c0_i32_0 = arith.constant 0 : i32
    return %arg0, %c0_i32 : i32, i32
  }
  func.func @transform_1(%arg0: i32) -> (i32, i32) {
    %c0_i32 = arith.constant 0 : i32
    %c0_i32_0 = arith.constant 0 : i32
    %c0_i32_1 = arith.constant 0 : i32
    return %c0_i32, %c0_i32_0 : i32, i32
  }
  func.func @transform_2(%arg0: i32) -> (i32, i32) {
    %c0_i32 = arith.constant 0 : i32
    %c0_i32_0 = arith.constant 0 : i32
    %c0_i32_1 = arith.constant 0 : i32
    return %c0_i32, %c0_i32_0 : i32, i32
  }
  func.func @transform_3(%arg0: i32) -> (i32, i32) {
    %c0_i32 = arith.constant 0 : i32
    %c0_i32_0 = arith.constant 0 : i32
    return %arg0, %c0_i32 : i32, i32
  }
}

</mosaic_0001>

<llo_original>
// kernel: tpu_custom_call.1
$region0: #{tpu_custom_call.1}
  #allocation0 [shape = 'u32[]', space=smem, size = 0x4, offset = 0x4, fixed_abs, tag = 'smem constant byte address 0x4 - core index']
  #allocation1 [shape = 'u32[144,128]{1,0:T(1,128)}', space=vmem, size = 0x12000, scoped, tag = 'internal scratch']
  %s0 = inlined_call_operand.hbm [shape: f32[16,32], index: 0, kind: input, shape index: {}]
  %s1 = inlined_call_operand.vmem [shape: f32[1,32], index: 1, kind: input, shape index: {}]
  %s2 = inlined_call_operand.vmem [shape: f32[1,32], index: 2, kind: input, shape index: {}]
  %s3 = inlined_call_operand.hbm [shape: bf16[16,32], index: 3, kind: output, shape index: {}]
  %s4 = sld [smem:[#allocation0]]
  $region26: #{tpu_custom_call.1} parent=0
    _
  %s6 = ssub.s32 1, %s4
  %s7 = scalar_select 0, %s6, %s4
  $region1: #{tpu_custom_call.1} parent=0
    #allocation2 [shape = 'u8[8192]{0}', space=vmem, size = 0x2000, scoped, tag = 'input window, operand 0, single buffered']
    #allocation3 [shape = 's32[1]{0}', space=sflag, size = 0x4, scoped, tag = 'scoped memory for tpu_custom_call.1']
    #allocation4 [shape = 's32[1]{0}', space=sflag, size = 0x4, scoped, tag = 'scoped memory for tpu_custom_call.1']
    #allocation5 [shape = 'u8[4096]{0}', space=vmem, size = 0x1000, scoped, tag = 'output window, operand 0, single buffered']
    %8 = vsyncpa [#allocation3], 0
    %9 = vsyncpa [#allocation4], 0
    // Predicated region
    $region2: #{tpu_custom_call.1} parent=1 // pred_check
      _
    $region3: #{tpu_custom_call.1} parent=1 // pred_check_branch
      %11 = sbr.rel (0) target = $region5
    $region4: #{tpu_custom_call.1} parent=1 // pred_region
      %s13 = ssub.s32 256, 256
      %14 = vsyncadd [#allocation3], %s13
      %s15 = sshll.u32 [#allocation2], 4
      %s16 = int_to_ptr.vmem [resolvable:$true] %s15
      %21 = dma.hbm_to_vmem [thread:$0]  %s0, 256, %s16, [#allocation3], 128, 128, 8
    $region5: #{tpu_custom_call.1} parent=1 // pred_fallthru
      _
    // Predicated region
    $region6: #{tpu_custom_call.1} parent=1 // pred_check
      _
    $region7: #{tpu_custom_call.1} parent=1 // pred_check_branch
      %23 = sbr.rel (0) target = $region9
    $region8: #{tpu_custom_call.1} parent=1 // pred_region
      _
    $region9: #{tpu_custom_call.1} parent=1 // pred_fallthru
      _
    // Predicated region
    $region10: #{tpu_custom_call.1} parent=1 // pred_check
      _
    $region11: #{tpu_custom_call.1} parent=1 // pred_check_branch
      %25 = sbr.rel (0) target = $region13
    $region12: #{tpu_custom_call.1} parent=1 // pred_region
      _
    $region13: #{tpu_custom_call.1} parent=1 // pred_fallthru
      _
    // Predicated region
    $region14: #{tpu_custom_call.1} parent=1 // pred_check
      _
    $region15: #{tpu_custom_call.1} parent=1 // pred_check_branch
      %27 = sbr.rel (0) target = $region17
    $region16: #{tpu_custom_call.1} parent=1 // pred_region
      %28 = dma.done [#allocation3], 256
    $region17: #{tpu_custom_call.1} parent=1 // pred_fallthru
      _
    %v29 = vld [vmem:[#allocation2] sm:$0xff]
    %v30 = vld [vmem:[#allocation2 + $0x8] sm:$0xff]
    %v31 = vld [vmem:[%s1] sm:$0x1]
    %v32 = vld [vmem:[%s2] sm:$0x1]
    %vm33 = vcmask 261120
    %v34 = vsel %vm33, %v29, 0.0
    %35 = vadd.xlane.f32.xlu0 %v34
    %v36 = vpop.xlane.xlu0 %35
    %v37 = vsel %vm33, %v30, 0.0
    %38 = vadd.xlane.f32.xlu0 %v37
    %v39 = vpop.xlane.xlu0 %38
    %v40 = vrcp.pop 32.0
    %v41 = vmul.f32 %v36, %v40
    %v42 = vmul.f32 %v39, %v40
    %v43 = vsub.f32 %v29, %v41
    %v44 = vsub.f32 %v30, %v42
    %v45 = vmul.f32 %v43, %v43
    %v46 = vmul.f32 %v44, %v44
    %v47 = vsel %vm33, %v45, 0.0
    %48 = vadd.xlane.f32.xlu0 %v47
    %v49 = vpop.xlane.xlu0 %48
    %v50 = vsel %vm33, %v46, 0.0
    %51 = vadd.xlane.f32.xlu0 %v50
    %v52 = vpop.xlane.xlu0 %51
    %v53 = vmul.f32 %v49, %v40
    %v54 = vmul.f32 %v52, %v40
    %v55 = vadd.f32 %v53, 1e-12
    %v56 = vadd.f32 %v54, 1e-12
    %v57 = vrsqrt.pop %v55
    %v58 = vrsqrt.pop %v56
    %v59 = vmul.f32 %v43, %v57
    %v60 = vmul.f32 %v44, %v58
    %v62 = vlaneseq
    %v63 = vshrl.u32 %v62, 7
    %v64 = vsub.s32 0, %v63
    %v65 = vrot.slane %v31, %v64
    %v67 = vmul.f32 %v59, %v65
    %v68 = vmul.f32 %v60, %v65
    %v70 = vlaneseq
    %v71 = vshrl.u32 %v70, 7
    %v72 = vsub.s32 0, %v71
    %v73 = vrot.slane %v32, %v72
    %v75 = vadd.f32 %v67, %v73
    %v76 = vadd.f32 %v68, %v73
    %v77 = vpack.c.bf16 %v76, %v75
    %v79 = vunpack.c.l.b16 %v77
    %v80 = vunpack.c.h.b16 %v77
    %v81 = vpack.c.b16 %v79, %v79
    %v82 = vpack.c.b16 %v80, %v80
    %vm85 = vcmask 257024
    %86 = vst.msk [vmem:[#allocation5] sm:$0xf] %vm85, %v81
    %87 = vst.msk [vmem:[#allocation5 + $0x4] sm:$0xf] %vm85, %v82
    // Predicated region
    $region18: #{tpu_custom_call.1} parent=1 // pred_check
      _
    $region19: #{tpu_custom_call.1} parent=1 // pred_check_branch
      %89 = sbr.rel (0) target = $region21
    $region20: #{tpu_custom_call.1} parent=1 // pred_region
      %s91 = ssub.s32 128, 128
      %92 = vsyncadd [#allocation4], %s91
      %s93 = sshll.u32 [#allocation5], 4
      %s94 = int_to_ptr.vmem [resolvable:$true] %s93
      %99 = dma.vmem_to_hbm [thread:$0]  %s94, 128, %s3, [#allocation4], 64, 64, 4
    $region21: #{tpu_custom_call.1} parent=1 // pred_fallthru
      _
    // Predicated region
    $region22: #{tpu_custom_call.1} parent=1 // pred_check
      _
    $region23: #{tpu_custom_call.1} parent=1 // pred_check_branch
      %101 = sbr.rel (0) target = $region25
    $region24: #{tpu_custom_call.1} parent=1 // pred_region
      %102 = dma.done [#allocation4], 128
    $region25: #{tpu_custom_call.1} parent=1 // pred_fallthru
      _
    %103 = vsyncpa [#allocation3], 1
    %104 = vsyncpa [#allocation4], 1

</llo_original>
